<compile_context>
chip_gen: v7x
topology: tpu7x:2x2x1
jax: 0.10.0
libtpu: 0.0.40
codegen_flags: <defaults>
</compile_context>

<pallas_src>
import functools

import jax
import jax.numpy as jnp
from jax.experimental import pallas as pl
from jax.experimental.pallas import tpu as pltpu


# ---------------------------------------------------------------------------
# Hardware introspection (perf-only; any misdetection stays correct)
# ---------------------------------------------------------------------------
def _tpu_target():
    """Return (tensorcores_per_chip, vmem_limit_bytes) with safe fallbacks."""
    kind = ""
    try:
        kind = (jax.devices()[0].device_kind or "").lower()
    except Exception:
        pass
    two_tc = ("v7" in kind) or ("7x" in kind) or ("v4" in kind) or ("v5p" in kind)
    # v7x has 64 MiB VMEM per TensorCore; v5e/v6e have 128 MiB.
    vmem_limit = (48 * 1024 * 1024 if ("v7" in kind or "7x" in kind)
                  else 64 * 1024 * 1024)
    try:  # refine from the hardware query when available
        cap = int(getattr(pltpu.get_tpu_info(), "vmem_capacity_bytes", 0))
        if cap > 0:
            vmem_limit = max(16 * 1024 * 1024, min(vmem_limit, int(cap * 0.75)))
    except Exception:
        pass
    return (2 if two_tc else 1), vmem_limit


# ---------------------------------------------------------------------------
# Kernel
# ---------------------------------------------------------------------------
def _wsq_partial_kernel(*refs, n_rows, tile_rows, tiles_per_split, need_mask,
                        lane_dense, split_axis, weighted):
    """Accumulate sum[_w] (x-t)^2 partials for one row tile into an (8,128) block."""
    if weighted:
        x_ref, t_ref, w_ref, out_ref = refs
    else:
        x_ref, t_ref, out_ref = refs
        w_ref = None

    if split_axis:
        i = pl.program_id(1)                                   # tile idx in split
        b_raw = pl.program_id(0) * tiles_per_split + i         # unclamped global tile idx
    else:
        i = pl.program_id(0)
        b_raw = i

    @pl.when(i == 0)
    def _init():
        out_ref[...] = jnp.zeros_like(out_ref)

    def accumulate(mask_rows):
        diff = x_ref[...].astype(jnp.float32) - t_ref[...].astype(jnp.float32)
        sq = diff * diff
        if weighted:
            sq = w_ref[...].astype(jnp.float32) * sq
        if mask_rows:
            rows = b_raw * tile_rows + jax.lax.broadcasted_iota(
                jnp.int32, (tile_rows, 1), 0)
            # Select (not a multiplicative 0/1 mask): kills NaN/Inf from
            # garbage rows read past the array bound / phantom tiles.
            sq = jnp.where(rows < n_rows, sq, jnp.float32(0.0))
        if lane_dense:
            # Per-lane partials: (tile_rows,128) -> (tile_rows//8, 8, 128) is a
            # layout-trivial regrouping of whole (8,128) tiles; the axis-0 sum
            # is pure vreg adds.  Cross-lane reduce deferred to the wrapper.
            out_ref[...] += jnp.sum(sq.reshape(tile_rows // 8, 8, 128), axis=0)
        else:
            out_ref[...] += jnp.sum(sq)

    if need_mask:
        # Only the tail tile (or a phantom tile from an uneven core split)
        # pays for iota/compare/select; steady-state tiles stay unmasked.
        is_tail = (b_raw + 1) * tile_rows > n_rows

        @pl.when(is_tail)
        def _tail():
            accumulate(True)

        @pl.when(jnp.logical_not(is_tail))
        def _steady():
            accumulate(False)
    else:
        accumulate(False)


# ---------------------------------------------------------------------------
# Tile sizing
# ---------------------------------------------------------------------------
def _pick_tile_rows(n, d_cols, x_itemsize, t_itemsize, w_cols, w_itemsize,
                    vmem_limit_bytes, max_rows):
    """Largest row tile (multiple of 8) whose pipelined VMEM footprint fits.

    Budgets 2x double-buffered x/t tiles, the lane-padded weight tile and f32
    intermediate headroom against ~60% of the scoped VMEM limit.
    """
    if n <= 8:
        return n                                     # full extent, no (8,) constraint
    d_pad = -(-d_cols // 128) * 128                  # lane padding in VMEM
    stream_row = d_pad * (x_itemsize + t_itemsize)   # per buffered row, inputs
    if w_cols is not None:
        stream_row += (-(-w_cols // 128) * 128) * w_itemsize
    interm_row = 2 * d_pad * 4                       # f32 temporaries headroom
    per_row = 2 * stream_row + interm_row            # x2: pipeline double-buffering
    budget = int(vmem_limit_bytes * 0.6)
    tm = budget // max(per_row, 1)
    if max_rows is not None:
        tm = min(tm, max_rows)
    tm = max(8, (int(tm) // 8) * 8)
    tm = min(tm, max(8, (n // 8) * 8))               # <= n, multiple of 8
    return int(tm)


# ---------------------------------------------------------------------------
# Launcher
# ---------------------------------------------------------------------------
def _pallas_sq_sum(x2d, t2d, w2d=None, *, max_rows_per_tile=None):
    """sum_{n,d} [w *] (x[n,d]-t[n,d])^2 via a tiled, pipelined Pallas kernel."""
    n, d = x2d.shape
    weighted = w2d is not None
    num_tc, vmem_limit = _tpu_target()

    tile_rows = _pick_tile_rows(
        n, d,
        jnp.dtype(x2d.dtype).itemsize, jnp.dtype(t2d.dtype).itemsize,
        w2d.shape[1] if weighted else None,
        jnp.dtype(w2d.dtype).itemsize if weighted else None,
        vmem_limit, max_rows_per_tile)

    num_tiles = pl.cdiv(n, tile_rows)
    num_splits = num_tc if (num_tc > 1 and num_tiles >= 2) else 1
    tiles_per_split = pl.cdiv(num_tiles, num_splits)
    split_axis = num_splits > 1
    need_mask = (n % tile_rows != 0) or (num_splits * tiles_per_split != num_tiles)
    lane_dense = (d == 128) and (tile_rows % 8 == 0)

    if split_axis:
        grid = (num_splits, tiles_per_split)
        dim_sem = ("parallel", "arbitrary")

        def data_idx(c, i):
            # Clamp phantom tiles (odd tile counts) to the last real block;
            # their rows are fully masked out inside the kernel.
            return (jnp.minimum(c * tiles_per_split + i, num_tiles - 1), 0)

        out_idx = lambda c, i: (c, 0)
    else:
        grid = (num_tiles,)
        dim_sem = ("arbitrary",)
        data_idx = lambda i: (i, 0)
        out_idx = lambda i: (0, 0)

    in_specs = [pl.BlockSpec((tile_rows, d), data_idx),
                pl.BlockSpec((tile_rows, d), data_idx)]
    operands = [x2d, t2d]
    if weighted:
        in_specs.append(pl.BlockSpec((tile_rows, w2d.shape[1]), data_idx))
        operands.append(w2d)

    kernel = functools.partial(
        _wsq_partial_kernel, n_rows=n, tile_rows=tile_rows,
        tiles_per_split=tiles_per_split, need_mask=need_mask,
        lane_dense=lane_dense, split_axis=split_axis, weighted=weighted)

    partials = pl.pallas_call(
        kernel,
        out_shape=jax.ShapeDtypeStruct((num_splits * 8, 128), jnp.float32),
        grid=grid,
        in_specs=in_specs,
        out_specs=pl.BlockSpec((8, 128), out_idx),
        compiler_params=pltpu.CompilerParams(
            dimension_semantics=dim_sem,
            vmem_limit_bytes=vmem_limit),
    )(*operands)

    if lane_dense:
        # Per-lane partials: reduce everything (splits x sublanes x lanes).
        return jnp.sum(partials)
    # General-D path: every element of a split's (8,128) block holds that
    # split's running scalar sum.
    return jnp.sum(partials.reshape(num_splits, 8, 128)[:, 0, 0])


# ---------------------------------------------------------------------------
# Public wrapper (WeightedMSELoss.forward equivalent)
# ---------------------------------------------------------------------------
def weighted_mse_loss(inp, target, weights=None, size_average=True, *,
                      pallas_min_bytes=256 * 1024, max_rows_per_tile=None):
    inp = jnp.asarray(inp)
    target = jnp.asarray(target)
    in_bytes = (inp.size * jnp.dtype(inp.dtype).itemsize
                + target.size * jnp.dtype(target.dtype).itemsize)
    small = in_bytes < pallas_min_bytes          # launch/DMA overhead dominates

    if weights is None:
        # nn.MSELoss(size_average): mean (or sum) of squared error over all elems.
        if small or (inp.ndim == 1 and inp.size % 128 != 0):
            diff = inp.astype(jnp.float32) - target.astype(jnp.float32)
            total = jnp.sum(diff * diff)
        else:
            if inp.size % 128 == 0:
                x2d = inp.reshape(-1, 128)       # lane-dense canonical layout
            else:
                x2d = inp.reshape(inp.shape[0], -1)
            t2d = target.reshape(x2d.shape)
            total = _pallas_sq_sum(x2d, t2d, None,
                                   max_rows_per_tile=max_rows_per_tile)
        return total / jnp.float32(inp.size) if size_average else total

    weights = jnp.asarray(weights)
    if inp.ndim > 2:
        # TODO(synk): >2-D inputs keep the torch broadcasting as-is via a jnp
        # fallback (weights vs (N, d2, ...) row-sums broadcasts exactly like
        # the torch original, which is only meaningful when trailing dims align).
        loss_rows = jnp.sum(
            (inp.astype(jnp.float32) - target.astype(jnp.float32)) ** 2, axis=1)
        res = jnp.sum(weights.astype(jnp.float32) * loss_rows)
    elif inp.ndim == 1:
        # torch skips the dim=1 sum for 1-D inputs -> purely elementwise.
        if (not small) and inp.size % 128 == 0 and weights.shape == inp.shape:
            x2d = inp.reshape(-1, 128)
            t2d = target.reshape(-1, 128)
            w2d = weights.reshape(-1, 128)       # lane-dense full-width weights
            res = _pallas_sq_sum(x2d, t2d, w2d,
                                 max_rows_per_tile=max_rows_per_tile)
        else:
            diff = inp.astype(jnp.float32) - target.astype(jnp.float32)
            res = jnp.sum(weights.astype(jnp.float32) * diff * diff)
    else:  # 2-D (N, D)
        n = inp.shape[0]
        if small or weights.size != n:
            diff = inp.astype(jnp.float32) - target.astype(jnp.float32)
            loss_rows = jnp.sum(diff * diff, axis=1)
            res = jnp.sum(weights.astype(jnp.float32) * loss_rows)
        else:
            res = _pallas_sq_sum(inp, target, weights.reshape(n, 1),
                                 max_rows_per_tile=max_rows_per_tile)

    if size_average:
        res = res / jnp.float32(weights.shape[0])   # res /= len(weights)
    return res


# ---------------------------------------------------------------------------
# Demo / self-test
# ---------------------------------------------------------------------------
if __name__ == "__main__":
    key = jax.random.PRNGKey(0)
    k1, k2, k3 = jax.random.split(key, 3)

    # Force the Pallas path and small tiles so multi-tile grids, the tail-gated
    # mask and (on 2-TC chips) the phantom-tile clamp are all exercised.
    run = functools.partial(weighted_mse_loss, pallas_min_bytes=0,
                            max_rows_per_tile=16)

    # --- Case 1: 2-D weighted, D=96 (general-D path, partial tail tile). ----
    N, D = 40, 96
    x = jax.random.normal(k1, (N, D), dtype=jnp.float32)
    t = jax.random.normal(k2, (N, D), dtype=jnp.float32)
    w = jax.random.uniform(k3, (N,), dtype=jnp.float32)
    out_w = jax.block_until_ready(run(x, t, w, size_average=True))
    out_w_sum = jax.block_until_ready(run(x, t, w, size_average=False))
    ref_rows = jnp.sum((x - t) ** 2, axis=1)
    ref_w = jnp.sum(w * ref_rows) / N
    ref_w_sum = jnp.sum(w * ref_rows)

    # --- Case 2: 2-D weighted, D=128 (lane-dense deferred-reduce path). -----
    N2 = 48
    x2 = jax.random.normal(k1, (N2, 128), dtype=jnp.float32)
    t2 = jax.random.normal(k2, (N2, 128), dtype=jnp.float32)
    w2 = jax.random.uniform(k3, (N2,), dtype=jnp.float32)
    out_ld = jax.block_until_ready(run(x2, t2, w2, size_average=True))
    ref_ld = jnp.sum(w2 * jnp.sum((x2 - t2) ** 2, axis=1)) / N2

    # --- Case 3: unweighted (MSELoss), 4-D input flattened lane-dense. ------
    xu = jax.random.normal(k1, (2, 4, 16, 32), dtype=jnp.float32)
    tu = jax.random.normal(k2, (2, 4, 16, 32), dtype=jnp.float32)
    out_mse = jax.block_until_ready(run(xu, tu, None, size_average=True))
    ref_mse = jnp.mean((xu - tu) ** 2)

    # --- Case 4: 1-D weighted, lane-dense full-width weights + tail mask. ---
    M = 1280
    x1 = jax.random.normal(k1, (M,), dtype=jnp.float32)
    t1 = jax.random.normal(k2, (M,), dtype=jnp.float32)
    w1 = jax.random.uniform(k3, (M,), dtype=jnp.float32)
    out_1d = jax.block_until_ready(run(x1, t1, w1, size_average=True))
    ref_1d = jnp.sum(w1 * (x1 - t1) ** 2) / M

    assert jnp.allclose(out_w, ref_w, rtol=2e-4, atol=1e-5), (out_w, ref_w)
    assert jnp.allclose(out_w_sum, ref_w_sum, rtol=2e-4, atol=1e-5), (out_w_sum, ref_w_sum)
    assert jnp.allclose(out_ld, ref_ld, rtol=2e-4, atol=1e-5), (out_ld, ref_ld)
    assert jnp.allclose(out_mse, ref_mse, rtol=2e-4, atol=1e-5), (out_mse, ref_mse)
    assert jnp.allclose(out_1d, ref_1d, rtol=2e-4, atol=1e-5), (out_1d, ref_1d)

    print("KERNEL_OK")
</pallas_src>

<mosaic_0001>
module attributes {stable_mosaic.version = 11 : i64} {
  func.func @_wsq_partial_kernel(%arg0: i32, %arg1: memref<16x96xf32, #tpu.memory_space<vmem>>, %arg2: memref<16x96xf32, #tpu.memory_space<vmem>>, %arg3: memref<16x1xf32, #tpu.memory_space<vmem>>, %arg4: memref<8x128xf32, #tpu.memory_space<vmem>>) attributes {dimension_semantics = [#tpu.dimension_semantics<arbitrary>], iteration_bounds = array<i64: 3>, scalar_prefetch = 0 : i64, scratch_operands = 0 : i64, tpu.core_type = #tpu.core_type<tc>, window_params = [{transform_indices = @transform_0, window_bounds = array<i64: 16, 96>}, {transform_indices = @transform_1, window_bounds = array<i64: 16, 96>}, {transform_indices = @transform_2, window_bounds = array<i64: 16, 1>}, {pipeline_mode = #tpu.pipeline_mode<synchronous>, transform_indices = @transform_3, window_bounds = array<i64: 8, 128>}]} {
    %c0_i32 = arith.constant 0 : i32
    %0 = arith.cmpi eq, %arg0, %c0_i32 : i32
    %1 = arith.extui %0 : i1 to i32
    %c0_i32_0 = arith.constant 0 : i32
    %2 = arith.cmpi ne, %1, %c0_i32_0 : i32
    scf.if %2 {
      %cst = arith.constant 0.000000e+00 : f32
      %11 = vector.broadcast %cst : f32 to vector<8x128xf32>
      %c0 = arith.constant 0 : index
      %c0_3 = arith.constant 0 : index
      %12 = vector.load %arg4[%c0, %c0_3] : memref<8x128xf32, #tpu.memory_space<vmem>>, vector<8x128xf32>
      tpu.vector_store %arg4[%c0, %c0_3], %11 {strides = array<i32>} : memref<8x128xf32, #tpu.memory_space<vmem>>, vector<8x128xf32>,
    } else {
    }
    %c1_i32 = arith.constant 1 : i32
    %3 = arith.addi %arg0, %c1_i32 : i32
    %c16_i32 = arith.constant 16 : i32
    %4 = arith.muli %3, %c16_i32 : i32
    %c40_i32 = arith.constant 40 : i32
    %5 = arith.cmpi sgt, %4, %c40_i32 : i32
    %6 = arith.extui %5 : i1 to i32
    %c0_i32_1 = arith.constant 0 : i32
    %7 = arith.cmpi ne, %6, %c0_i32_1 : i32
    scf.if %7 {
      %c0 = arith.constant 0 : index
      %c0_3 = arith.constant 0 : index
      %11 = vector.load %arg1[%c0, %c0_3] : memref<16x96xf32, #tpu.memory_space<vmem>>, vector<16x96xf32>
      %c0_4 = arith.constant 0 : index
      %c0_5 = arith.constant 0 : index
      %12 = vector.load %arg2[%c0_4, %c0_5] : memref<16x96xf32, #tpu.memory_space<vmem>>, vector<16x96xf32>
      %13 = arith.subf %11, %12 : vector<16x96xf32>
      %14 = arith.mulf %13, %13 : vector<16x96xf32>
      %c0_6 = arith.constant 0 : index
      %c0_7 = arith.constant 0 : index
      %15 = vector.load %arg3[%c0_6, %c0_7] : memref<16x1xf32, #tpu.memory_space<vmem>>, vector<16x1xf32>
      %16 = vector.broadcast %15 : vector<16x1xf32> to vector<16x96xf32>
      %17 = arith.mulf %16, %14 : vector<16x96xf32>
      %c16_i32_8 = arith.constant 16 : i32
      %18 = arith.muli %arg0, %c16_i32_8 : i32
      %19 = tpu.iota {dimensions = array<i32: 0>} : vector<16x1xi32>
      %20 = vector.broadcast %18 : i32 to vector<16x1xi32>
      %21 = arith.addi %20, %19 : vector<16x1xi32>
      %c40_i32_9 = arith.constant 40 : i32
      %22 = vector.broadcast %c40_i32_9 : i32 to vector<16x1xi32>
      %23 = arith.cmpi slt, %21, %22 : vector<16x1xi32>
      %cst = arith.constant 0.000000e+00 : f32
      %24 = vector.shape_cast %23 : vector<16x1xi1> to vector<16x1xi1>
      %25 = vector.broadcast %24 : vector<16x1xi1> to vector<16x96xi1>
      %26 = vector.broadcast %cst : f32 to vector<16x96xf32>
      %27 = arith.select %25, %17, %26 : vector<16x96xi1>, vector<16x96xf32>
      %c0_10 = arith.constant 0 : index
      %c0_11 = arith.constant 0 : index
      %28 = vector.load %arg4[%c0_10, %c0_11] : memref<8x128xf32, #tpu.memory_space<vmem>>, vector<8x128xf32>
      %29 = vector.shape_cast %27 : vector<16x96xf32> to vector<1x16x96xf32>
      %cst_12 = arith.constant dense<0.000000e+00> : vector<1xf32>
      %30 = vector.multi_reduction <add>, %29, %cst_12 [1, 2] : vector<1x16x96xf32> to vector<1xf32>
      %31 = vector.shape_cast %30 : vector<1xf32> to vector<1x1x1xf32>
      %32 = vector.extract %31[0, 0, 0] : f32 from vector<1x1x1xf32>
      %33 = vector.broadcast %32 : f32 to vector<8x128xf32>
      %34 = arith.addf %28, %33 : vector<8x128xf32>
      %c0_13 = arith.constant 0 : index
      %c0_14 = arith.constant 0 : index
      %35 = vector.load %arg4[%c0_13, %c0_14] : memref<8x128xf32, #tpu.memory_space<vmem>>, vector<8x128xf32>
      tpu.vector_store %arg4[%c0_13, %c0_14], %34 {strides = array<i32>} : memref<8x128xf32, #tpu.memory_space<vmem>>, vector<8x128xf32>,
    } else {
    }
    %true = arith.constant true
    %8 = arith.xori %5, %true : i1
    %9 = arith.extui %8 : i1 to i32
    %c0_i32_2 = arith.constant 0 : i32
    %10 = arith.cmpi ne, %9, %c0_i32_2 : i32
    scf.if %10 {
      %c0 = arith.constant 0 : index
      %c0_3 = arith.constant 0 : index
      %11 = vector.load %arg1[%c0, %c0_3] : memref<16x96xf32, #tpu.memory_space<vmem>>, vector<16x96xf32>
      %c0_4 = arith.constant 0 : index
      %c0_5 = arith.constant 0 : index
      %12 = vector.load %arg2[%c0_4, %c0_5] : memref<16x96xf32, #tpu.memory_space<vmem>>, vector<16x96xf32>
      %13 = arith.subf %11, %12 : vector<16x96xf32>
      %14 = arith.mulf %13, %13 : vector<16x96xf32>
      %c0_6 = arith.constant 0 : index
      %c0_7 = arith.constant 0 : index
      %15 = vector.load %arg3[%c0_6, %c0_7] : memref<16x1xf32, #tpu.memory_space<vmem>>, vector<16x1xf32>
      %16 = vector.broadcast %15 : vector<16x1xf32> to vector<16x96xf32>
      %17 = arith.mulf %16, %14 : vector<16x96xf32>
      %c0_8 = arith.constant 0 : index
      %c0_9 = arith.constant 0 : index
      %18 = vector.load %arg4[%c0_8, %c0_9] : memref<8x128xf32, #tpu.memory_space<vmem>>, vector<8x128xf32>
      %19 = vector.shape_cast %17 : vector<16x96xf32> to vector<1x16x96xf32>
      %cst = arith.constant dense<0.000000e+00> : vector<1xf32>
      %20 = vector.multi_reduction <add>, %19, %cst [1, 2] : vector<1x16x96xf32> to vector<1xf32>
      %21 = vector.shape_cast %20 : vector<1xf32> to vector<1x1x1xf32>
      %22 = vector.extract %21[0, 0, 0] : f32 from vector<1x1x1xf32>
      %23 = vector.broadcast %22 : f32 to vector<8x128xf32>
      %24 = arith.addf %18, %23 : vector<8x128xf32>
      %c0_10 = arith.constant 0 : index
      %c0_11 = arith.constant 0 : index
      %25 = vector.load %arg4[%c0_10, %c0_11] : memref<8x128xf32, #tpu.memory_space<vmem>>, vector<8x128xf32>
      tpu.vector_store %arg4[%c0_10, %c0_11], %24 {strides = array<i32>} : memref<8x128xf32, #tpu.memory_space<vmem>>, vector<8x128xf32>,
    } else {
    }
    return
  }
  func.func @transform_0(%arg0: i32) -> (i32, i32) {
    %c0_i32 = arith.constant 0 : i32
    %c0_i32_0 = arith.constant 0 : i32
    return %arg0, %c0_i32 : i32, i32
  }
  func.func @transform_1(%arg0: i32) -> (i32, i32) {
    %c0_i32 = arith.constant 0 : i32
    %c0_i32_0 = arith.constant 0 : i32
    return %arg0, %c0_i32 : i32, i32
  }
  func.func @transform_2(%arg0: i32) -> (i32, i32) {
    %c0_i32 = arith.constant 0 : i32
    %c0_i32_0 = arith.constant 0 : i32
    return %arg0, %c0_i32 : i32, i32
  }
  func.func @transform_3(%arg0: i32) -> (i32, i32) {
    %c0_i32 = arith.constant 0 : i32
    %c0_i32_0 = arith.constant 0 : i32
    %c0_i32_1 = arith.constant 0 : i32
    return %c0_i32, %c0_i32_0 : i32, i32
  }
}

</mosaic_0001>

<llo_original>
// kernel: tpu_custom_call.1
$region0: #{tpu_custom_call.1}
  #allocation0 [shape = 'u32[]', space=smem, size = 0x4, offset = 0x4, fixed_abs, tag = 'smem constant byte address 0x4 - core index']
  #allocation1 [shape = 'u32[144,128]{1,0:T(1,128)}', space=vmem, size = 0x12000, scoped, tag = 'internal scratch']
  %s0 = inlined_call_operand.hbm [shape: f32[40,96], index: 0, kind: input, shape index: {}]
  %s1 = inlined_call_operand.hbm [shape: f32[40,96], index: 1, kind: input, shape index: {}]
  %s2 = inlined_call_operand.hbm [shape: f32[40,1], index: 2, kind: input, shape index: {}]
  %s3 = inlined_call_operand.hbm [shape: f32[8,128], index: 3, kind: output, shape index: {}]
  %s4 = sld [smem:[#allocation0]]
  $region69: #{tpu_custom_call.1} parent=0
    _
  %s6 = ssub.s32 1, %s4
  %s7 = scalar_select 0, %s6, %s4
  $region1: #{tpu_custom_call.1} parent=0
    #allocation2 [shape = 'u8[16384]{0}', space=vmem, size = 0x4000, scoped, tag = 'input window, operand 0']
    #allocation3 [shape = 's32[2]{0}', space=sflag, size = 0x8, scoped, tag = 'scoped memory for tpu_custom_call.1']
    #allocation4 [shape = 's32[2]{0}', space=sflag, size = 0x8, scoped, tag = 'scoped memory for tpu_custom_call.1']
    #allocation5 [shape = 'u8[16384]{0}', space=vmem, size = 0x4000, scoped, tag = 'input window, operand 1']
    #allocation6 [shape = 's32[2]{0}', space=sflag, size = 0x8, scoped, tag = 'scoped memory for tpu_custom_call.1']
    #allocation7 [shape = 'u8[16384]{0}', space=vmem, size = 0x4000, scoped, tag = 'input window, operand 2']
    #allocation8 [shape = 'u8[4096]{0}', space=vmem, size = 0x1000, scoped, tag = 'output window, operand 0, single buffered']
    %8 = vsyncpa [#allocation3], 0
    %s9 = scalar_lea.sflag [#allocation3], 1
    %10 = vsyncpa %s9, 0
    %11 = vsyncpa [#allocation6], 0
    %s12 = scalar_lea.sflag [#allocation6], 1
    %13 = vsyncpa %s12, 0
    %14 = vsyncpa [#allocation4], 0
    loop: start=0, step=1, limit=5
    $region2: #{tpu_custom_call.1} parent=1 // loop_pre_header
      _
    $region3: #{tpu_custom_call.1} parent=1 // loop_header
      %s16 = sphi 0, %s20
      %p17 = scmp.ge.s32.totalorder %s16, 5
      %s26 = sphi 0, %s28
      %s29 = sphi 0, %s26
      %s30 = sphi 0, %s29
      %s46 = sphi 0, %s30
      %s52 = sphi 0, %s54
      %s55 = sphi 0, %s52
      %s56 = sphi 0, %s55
      %s72 = sphi 0, %s56
      %s78 = sphi 0, %s80
      %s81 = sphi 0, %s78
      %s82 = sphi 0, %s81
      %s98 = sphi 0, %s82
      %s102 = sphi 0, %s102
      %s104 = sphi 0, %s102
      %s105 = sphi 0, %s104
      %s119 = sphi 0, %s105
    $region4: #{tpu_custom_call.1} parent=1 // loop_header_branch
      %19 = sbr.rel (%p17) target = $region8
    $region5: #{tpu_custom_call.1} parent=1 // loop_body
      %s21 = ssub.s32 %s16, 1
      %s22 = ssub.s32 %s16, 2
      %s23 = sadd.s32 %s16, 1
      %s24 = ssub.s32 %s16, %s23
      %p25 = scmp.eq.s32.totalorder %s24, 0
      %s27 = sadd.s32 %s26, 1
      %s28 = scalar_select %p25, %s26, %s27
      %p31 = pneg %p25
      %p32 = scmp.eq.s32.totalorder %s16, 2
      %p33 = por %p31, %p32
      %p34 = scmp.ne.s32.totalorder %s26, %s29
      %p35 = scmp.eq.s32.totalorder %s16, 0
      %p36 = por %p34, %p35
      %p37 = scmp.ne.s32.totalorder %s26, %s29
      %p38 = scmp.eq.s32.totalorder %s21, 2
      %p39 = por %p37, %p38
      %p40 = scmp.ne.s32.totalorder %s29, %s30
      %p41 = scmp.eq.s32.totalorder %s21, 0
      %p42 = por %p40, %p41
      %p43 = scmp.ne.s32.totalorder %s29, %s30
      %p44 = scmp.eq.s32.totalorder %s22, 2
      %p45 = por %p43, %p44
      %p47 = scmp.ne.s32.totalorder %s30, %s46
      %p48 = scmp.eq.s32.totalorder %s22, 0
      %p49 = por %p47, %p48
      %s50 = ssub.s32 %s16, %s23
      %p51 = scmp.eq.s32.totalorder %s50, 0
      %s53 = sadd.s32 %s52, 1
      %s54 = scalar_select %p51, %s52, %s53
      %p57 = pneg %p51
      %p58 = scmp.eq.s32.totalorder %s16, 2
      %p59 = por %p57, %p58
      %p60 = scmp.ne.s32.totalorder %s52, %s55
      %p61 = scmp.eq.s32.totalorder %s16, 0
      %p62 = por %p60, %p61
      %p63 = scmp.ne.s32.totalorder %s52, %s55
      %p64 = scmp.eq.s32.totalorder %s21, 2
      %p65 = por %p63, %p64
      %p66 = scmp.ne.s32.totalorder %s55, %s56
      %p67 = scmp.eq.s32.totalorder %s21, 0
      %p68 = por %p66, %p67
      %p69 = scmp.ne.s32.totalorder %s55, %s56
      %p70 = scmp.eq.s32.totalorder %s22, 2
      %p71 = por %p69, %p70
      %p73 = scmp.ne.s32.totalorder %s56, %s72
      %p74 = scmp.eq.s32.totalorder %s22, 0
      %p75 = por %p73, %p74
      %s76 = ssub.s32 %s16, %s23
      %p77 = scmp.eq.s32.totalorder %s76, 0
      %s79 = sadd.s32 %s78, 1
      %s80 = scalar_select %p77, %s78, %s79
      %p83 = pneg %p77
      %p84 = scmp.eq.s32.totalorder %s16, 2
      %p85 = por %p83, %p84
      %p86 = scmp.ne.s32.totalorder %s78, %s81
      %p87 = scmp.eq.s32.totalorder %s16, 0
      %p88 = por %p86, %p87
      %p89 = scmp.ne.s32.totalorder %s78, %s81
      %p90 = scmp.eq.s32.totalorder %s21, 2
      %p91 = por %p89, %p90
      %p92 = scmp.ne.s32.totalorder %s81, %s82
      %p93 = scmp.eq.s32.totalorder %s21, 0
      %p94 = por %p92, %p93
      %p95 = scmp.ne.s32.totalorder %s81, %s82
      %p96 = scmp.eq.s32.totalorder %s22, 2
      %p97 = por %p95, %p96
      %p99 = scmp.ne.s32.totalorder %s82, %s98
      %p100 = scmp.eq.s32.totalorder %s22, 0
      %p101 = por %p99, %p100
      %s103 = sadd.s32 %s102, 1
      %p106 = scmp.eq.s32.totalorder %s16, 2
      %p107 = scmp.ne.s32.totalorder %s102, %s104
      %p108 = scmp.eq.s32.totalorder %s16, 0
      %p109 = por %p107, %p108
      %p110 = scmp.ne.s32.totalorder %s102, %s104
      %p111 = scmp.eq.s32.totalorder %s21, 2
      %p112 = por %p110, %p111
      %p113 = scmp.ne.s32.totalorder %s104, %s105
      %p114 = scmp.eq.s32.totalorder %s21, 0
      %p115 = por %p113, %p114
      %p116 = scmp.ne.s32.totalorder %s104, %s105
      %p117 = scmp.eq.s32.totalorder %s22, 2
      %p118 = por %p116, %p117
      %p120 = scmp.ne.s32.totalorder %s105, %s119
      %p121 = scmp.eq.s32.totalorder %s22, 0
      %p122 = por %p120, %p121
      %p123 = scmp.le.s32.totalorder 1, %s16
      %p124 = scmp.lt.s32.totalorder %s16, 4
      %p125 = pnand %p123, %p124
      %p126 = pneg %p125
      // Predicated region
      $region9: #{tpu_custom_call.1} parent=5 // pred_check
        _
      $region10: #{tpu_custom_call.1} parent=5 // pred_check_branch
        %128 = sbr.rel (%p125) target = $region12
      $region11: #{tpu_custom_call.1} parent=5 // pred_region
        %s129 = ssub.s32 %s16, 1
      $region12: #{tpu_custom_call.1} parent=5 // pred_fallthru
        _
      %p130 = scmp.lt.s32.totalorder %s16, 3
      // Predicated region
      $region13: #{tpu_custom_call.1} parent=5 // pred_check
        %p131 = pneg %p130
      $region14: #{tpu_custom_call.1} parent=5 // pred_check_branch
        %133 = sbr.rel (%p131) target = $region16
      $region15: #{tpu_custom_call.1} parent=5 // pred_region
        // Predicated region
        $region17: #{tpu_custom_call.1} parent=15 // pred_check
          %p134 = pneg %p36
        $region18: #{tpu_custom_call.1} parent=15 // pred_check_branch
          %136 = sbr.rel (%p134) target = $region20
        $region19: #{tpu_custom_call.1} parent=15 // pred_region
          %s137 = sand.u32 %s26, 1
          %s138 = scalar_lea.sflag [#allocation3], %s137
          %s139 = sand.u32 %s26, 1
          %s140 = smul.addr %s139, 16
          %s141 = scalar_lea.vmem [#allocation2], %s140
          %s142 = smul.u32 2, %s16
          %s143 = ssub.s32 5, %s142
          %p144 = scmp.lt.s32.totalorder %s143, 2
          %s145 = scalar_select %p144, %s143, 2
          %s146 = smul.u32 128, %s145
          %s148 = ssub.s32 256, %s146
          %149 = vsyncadd %s138, %s148
          %p150 = scmp.ne.s32.totalorder 0, %s146
          %s151 = smul.addr %s142, 128
          %s152 = scalar_lea.hbm %s0, %s151
          %s153 = smul.u32 8, %s145
          %s154 = sshll.u32 %s141, 4
          %s155 = int_to_ptr.vmem [resolvable:$true] %s154
          %s156 = sshll.u32 %s153, 4
          %160 = dma.hbm_to_vmem [thread:$0]  (%p150), %s152, %s156, %s155, %s138, 128, 128, 8
        $region20: #{tpu_custom_call.1} parent=15 // pred_fallthru
          _
        // Predicated region
        $region21: #{tpu_custom_call.1} parent=15 // pred_check
          %p161 = pneg %p62
        $region22: #{tpu_custom_call.1} parent=15 // pred_check_branch
          %163 = sbr.rel (%p161) target = $region24
        $region23: #{tpu_custom_call.1} parent=15 // pred_region
          %s164 = sand.u32 %s16, 1
          %s165 = scalar_lea.sflag [#allocation6], %s164
          %s166 = sand.u32 %s52, 1
          %s167 = smul.addr %s166, 16
          %s168 = scalar_lea.vmem [#allocation5], %s167
          %s169 = smul.u32 2, %s16
          %s170 = ssub.s32 5, %s169
          %p171 = scmp.lt.s32.totalorder %s170, 2
          %s172 = scalar_select %p171, %s170, 2
          %s173 = smul.u32 128, %s172
          %s175 = ssub.s32 256, %s173
          %176 = vsyncadd %s165, %s175
          %p177 = scmp.ne.s32.totalorder 0, %s173
          %s178 = smul.addr %s169, 128
          %s179 = scalar_lea.hbm %s1, %s178
          %s180 = smul.u32 8, %s172
          %s181 = sshll.u32 %s168, 4
          %s182 = int_to_ptr.vmem [resolvable:$true] %s181
          %s183 = sshll.u32 %s180, 4
          %187 = dma.hbm_to_vmem [thread:$0]  (%p177), %s179, %s183, %s182, %s165, 128, 128, 8
        $region24: #{tpu_custom_call.1} parent=15 // pred_fallthru
          _
        // Predicated region
        $region25: #{tpu_custom_call.1} parent=15 // pred_check
          %p188 = pneg %p88
        $region26: #{tpu_custom_call.1} parent=15 // pred_check_branch
          %190 = sbr.rel (%p188) target = $region28
        $region27: #{tpu_custom_call.1} parent=15 // pred_region
          %s191 = sand.u32 %s16, 1
          %s192 = scalar_lea.sflag [#allocation6], %s191
          %s193 = sand.u32 %s78, 1
          %s194 = smul.addr %s193, 16
          %s195 = scalar_lea.vmem [#allocation7], %s194
          %s196 = smul.u32 2, %s16
          %s197 = ssub.s32 5, %s196
          %p198 = scmp.lt.s32.totalorder %s197, 2
          %s199 = scalar_select %p198, %s197, 2
          %s200 = smul.u32 128, %s199
          %s202 = ssub.s32 256, %s200
          %203 = vsyncadd %s192, %s202
          %p204 = scmp.ne.s32.totalorder 0, %s200
          %s205 = smul.addr %s196, 128
          %s206 = scalar_lea.hbm %s2, %s205
          %s207 = smul.u32 8, %s199
          %s208 = sshll.u32 %s195, 4
          %s209 = int_to_ptr.vmem [resolvable:$true] %s208
          %s210 = sshll.u32 %s207, 4
          %214 = dma.hbm_to_vmem [thread:$0]  (%p204), %s206, %s210, %s209, %s192, 128, 128, 8
        $region28: #{tpu_custom_call.1} parent=15 // pred_fallthru
          _
      $region16: #{tpu_custom_call.1} parent=5 // pred_fallthru
        _
      %p215 = scmp.le.s32.totalorder 1, %s16
      %p216 = scmp.lt.s32.totalorder %s16, 4
      %p217 = pnand %p215, %p216
      %p218 = pneg %p217
      // Predicated region
      $region29: #{tpu_custom_call.1} parent=5 // pred_check
        _
      $region30: #{tpu_custom_call.1} parent=5 // pred_check_branch
        %220 = sbr.rel (%p217) target = $region32
      $region31: #{tpu_custom_call.1} parent=5 // pred_region
        %s221 = ssub.s32 %s16, 1
        %s222 = sand.u32 %s29, 1
        %s223 = scalar_lea.sflag [#allocation3], %s222
        %s224 = sand.u32 %s29, 1
        %s225 = smul.addr %s224, 16
        %s226 = scalar_lea.vmem [#allocation2], %s225
        // Predicated region
        $region33: #{tpu_custom_call.1} parent=31 // pred_check
          %p227 = pneg %p42
        $region34: #{tpu_custom_call.1} parent=31 // pred_check_branch
          %229 = sbr.rel (%p227) target = $region36
        $region35: #{tpu_custom_call.1} parent=31 // pred_region
          %230 = dma.done %s223, 256
        $region36: #{tpu_custom_call.1} parent=31 // pred_fallthru
          _
        %s231 = sand.u32 %s21, 1
        %s232 = scalar_lea.sflag [#allocation6], %s231
        %s233 = sand.u32 %s55, 1
        %s234 = smul.addr %s233, 16
        %s235 = scalar_lea.vmem [#allocation5], %s234
        // Predicated region
        $region37: #{tpu_custom_call.1} parent=31 // pred_check
          %p236 = pneg %p68
        $region38: #{tpu_custom_call.1} parent=31 // pred_check_branch
          %238 = sbr.rel (%p236) target = $region40
        $region39: #{tpu_custom_call.1} parent=31 // pred_region
          %239 = dma.done %s232, 256
        $region40: #{tpu_custom_call.1} parent=31 // pred_fallthru
          _
        %s240 = sand.u32 %s21, 1
        %s241 = scalar_lea.sflag [#allocation6], %s240
        %s242 = sand.u32 %s81, 1
        %s243 = smul.addr %s242, 16
        %s244 = scalar_lea.vmem [#allocation7], %s243
        // Predicated region
        $region41: #{tpu_custom_call.1} parent=31 // pred_check
          %p245 = pneg %p94
        $region42: #{tpu_custom_call.1} parent=31 // pred_check_branch
          %247 = sbr.rel (%p245) target = $region44
        $region43: #{tpu_custom_call.1} parent=31 // pred_region
          %248 = dma.done %s241, 256
        $region44: #{tpu_custom_call.1} parent=31 // pred_fallthru
          _
        %s249 = sand.u32 %s29, 1
        %s250 = scalar_lea.sflag [#allocation3], %s249
        %s251 = sand.u32 %s29, 1
        %s252 = smul.addr %s251, 16
        %s253 = scalar_lea.vmem [#allocation2], %s252
        %p254 = pneg %p42
        %p255 = pneg %p39
        %s256 = sand.u32 %s21, 1
        %s257 = scalar_lea.sflag [#allocation6], %s256
        %s258 = sand.u32 %s55, 1
        %s259 = smul.addr %s258, 16
        %s260 = scalar_lea.vmem [#allocation5], %s259
        %p261 = pneg %p68
        %p262 = pneg %p65
        %s263 = sand.u32 %s21, 1
        %s264 = scalar_lea.sflag [#allocation6], %s263
        %s265 = sand.u32 %s81, 1
        %s266 = smul.addr %s265, 16
        %s267 = scalar_lea.vmem [#allocation7], %s266
        %p268 = pneg %p94
        %p269 = pneg %p91
        %p270 = pneg %p115
        %p271 = pneg %p112
        %s272 = smul.u32 2, %s21
        %s273 = ssub.s32 5, %s272
        %p274 = scmp.lt.s32.totalorder %s273, 2
        %s275 = scalar_select %p274, %s273, 2
        %s276 = smul.u32 128, %s275
        %s277 = smul.u32 2, %s21
        %s278 = ssub.s32 5, %s277
        %p279 = scmp.lt.s32.totalorder %s278, 2
        %s280 = scalar_select %p279, %s278, 2
        %s281 = smul.u32 128, %s280
        %s282 = smul.u32 2, %s21
        %s283 = ssub.s32 5, %s282
        %p284 = scmp.lt.s32.totalorder %s283, 2
        %s285 = scalar_select %p284, %s283, 2
        %s286 = smul.u32 128, %s285
        %p287 = scmp.eq.s32.totalorder %s21, 0
        // Predicated region
        $region45: #{tpu_custom_call.1} parent=31 // pred_check
          %p288 = pneg %p287
        $region46: #{tpu_custom_call.1} parent=31 // pred_check_branch
          %290 = sbr.rel (%p288) target = $region48
        $region47: #{tpu_custom_call.1} parent=31 // pred_region
          %291 = vst [vmem:[#allocation8] sm:$0xff] 0.0
        $region48: #{tpu_custom_call.1} parent=31 // pred_fallthru
          _
        %s292 = sadd.s32 %s21, 1
        %s293 = smul.u32 %s292, 16
        %p294 = scmp.gt.s32.totalorder %s293, 40
        // Predicated region
        $region49: #{tpu_custom_call.1} parent=31 // pred_check
          %p295 = pneg %p294
        $region50: #{tpu_custom_call.1} parent=31 // pred_check_branch
          %297 = sbr.rel (%p295) target = $region52
        $region51: #{tpu_custom_call.1} parent=31 // pred_region
          %v298 = vld [vmem:[%s226] sm:$0xff]
          %v299 = vld [vmem:[%s226 + $0x8] sm:$0xff]
          %v300 = vld [vmem:[%s235] sm:$0xff]
          %v301 = vld [vmem:[%s235 + $0x8] sm:$0xff]
          %v302 = vsub.f32 %v298, %v300
          %v303 = vsub.f32 %v299, %v301
          %v304 = vmul.f32 %v302, %v302
          %v305 = vmul.f32 %v303, %v303
          %v306 = vld [vmem:[%s244] sm:$0xff]
          %v307 = vld [vmem:[%s244 + $0x8] sm:$0xff]
          %309 = vset.pattern.permute.xlu0 0
          %310 = vperm.xlu0 %309, %v306
          %v311 = vpop.permute.xlu0 %310
          %314 = vset.pattern.permute.xlu0 0
          %315 = vperm.xlu0 %314, %v307
          %v316 = vpop.permute.xlu0 %315
          %v318 = vmul.f32 %v311, %v304
          %v319 = vmul.f32 %v316, %v305
          %s320 = smul.u32 %s21, 16
          %v321 = vlaneseq
          %v322 = vshrl.u32 %v321, 7
          %v323 = vadd.s32 %v322, 8
          %v324 = vstv %s320
          %v325 = vadd.s32 %v324, %v322
          %v326 = vadd.s32 %v324, %v323
          %vm327 = vcmp.lt.s32.totalorder %v325, 40
          %vm328 = vcmp.lt.s32.totalorder %v326, 40
          %v329 = vsel %vm327, 1, 0
          %v330 = vsel %vm328, 1, 0
          %vm331 = vcmp.eq.s32.totalorder %v329, 1
          %vm332 = vcmp.eq.s32.totalorder %v330, 1
          %v333 = vsel %vm331, %v318, 0.0
          %v334 = vsel %vm332, %v319, 0.0
          %v335 = vld [vmem:[#allocation8] sm:$0xff]
          %vm336 = vcmask 785408
          %v337 = vsel %vm336, %v333, 0.0
          %v338 = vsel %vm336, %v334, 0.0
          %v339 = vadd.f32 %v337, %v338
          %340 = vadd.xlane.f32.xlu0 %v339
          %v341 = vpop.xlane.xlu0 %340
          %v342 = vrot.slane %v341, 4
          %v343 = vadd.f32 %v341, %v342
          %v344 = vrot.slane %v343, 2
          %v345 = vadd.f32 %v343, %v344
          %v346 = vrot.slane %v345, 1
          %v347 = vadd.f32 %v345, %v346
          %s348 = vtos %v347
          %v349 = vstv %s348
          %v350 = vadd.f32 %v335, %v349
          %351 = vst [vmem:[#allocation8] sm:$0xff] %v350
        $region52: #{tpu_custom_call.1} parent=31 // pred_fallthru
          _
        %p352 = scmp.le.s32.totalorder %s293, 40
        // Predicated region
        $region53: #{tpu_custom_call.1} parent=31 // pred_check
          %p353 = pneg %p352
        $region54: #{tpu_custom_call.1} parent=31 // pred_check_branch
          %355 = sbr.rel (%p353) target = $region56
        $region55: #{tpu_custom_call.1} parent=31 // pred_region
          %v356 = vld [vmem:[%s226] sm:$0xff]
          %v357 = vld [vmem:[%s226 + $0x8] sm:$0xff]
          %v358 = vld [vmem:[%s235] sm:$0xff]
          %v359 = vld [vmem:[%s235 + $0x8] sm:$0xff]
          %v360 = vsub.f32 %v356, %v358
          %v361 = vsub.f32 %v357, %v359
          %v362 = vmul.f32 %v360, %v360
          %v363 = vmul.f32 %v361, %v361
          %v364 = vld [vmem:[%s244] sm:$0xff]
          %v365 = vld [vmem:[%s244 + $0x8] sm:$0xff]
          %367 = vset.pattern.permute.xlu0 0
          %368 = vperm.xlu0 %367, %v364
          %v369 = vpop.permute.xlu0 %368
          %372 = vset.pattern.permute.xlu0 0
          %373 = vperm.xlu0 %372, %v365
          %v374 = vpop.permute.xlu0 %373
          %v376 = vmul.f32 %v369, %v362
          %v377 = vmul.f32 %v374, %v363
          %v378 = vld [vmem:[#allocation8] sm:$0xff]
          %vm379 = vcmask 785408
          %v380 = vsel %vm379, %v376, 0.0
          %v381 = vsel %vm379, %v377, 0.0
          %v382 = vadd.f32 %v380, %v381
          %383 = vadd.xlane.f32.xlu0 %v382
          %v384 = vpop.xlane.xlu0 %383
          %v385 = vrot.slane %v384, 4
          %v386 = vadd.f32 %v384, %v385
          %v387 = vrot.slane %v386, 2
          %v388 = vadd.f32 %v386, %v387
          %v389 = vrot.slane %v388, 1
          %v390 = vadd.f32 %v388, %v389
          %s391 = vtos %v390
          %v392 = vstv %s391
          %v393 = vadd.f32 %v378, %v392
          %394 = vst [vmem:[#allocation8] sm:$0xff] %v393
        $region56: #{tpu_custom_call.1} parent=31 // pred_fallthru
          _
        // Predicated region
        $region57: #{tpu_custom_call.1} parent=31 // pred_check
          %p395 = pneg %p112
        $region58: #{tpu_custom_call.1} parent=31 // pred_check_branch
          %397 = sbr.rel (%p395) target = $region60
        $region59: #{tpu_custom_call.1} parent=31 // pred_region
          %s399 = ssub.s32 128, 128
          %400 = vsyncadd [#allocation4], %s399
          %s402 = sshll.u32 [#allocation8], 4
          %s403 = int_to_ptr.vmem [resolvable:$true] %s402
          %405 = dma.vmem_to_hbm [thread:$0]  %s403, 128, %s3, [#allocation4]
        $region60: #{tpu_custom_call.1} parent=31 // pred_fallthru
          _
        // Predicated region
        $region61: #{tpu_custom_call.1} parent=31 // pred_check
          %p406 = pneg %p112
        $region62: #{tpu_custom_call.1} parent=31 // pred_check_branch
          %408 = sbr.rel (%p406) target = $region64
        $region63: #{tpu_custom_call.1} parent=31 // pred_region
          %409 = dma.done [#allocation4], 128
        $region64: #{tpu_custom_call.1} parent=31 // pred_fallthru
          _
      $region32: #{tpu_custom_call.1} parent=5 // pred_fallthru
        _
      %p410 = scmp.le.s32.totalorder 2, %s16
      // Predicated region
      $region65: #{tpu_custom_call.1} parent=5 // pred_check
        %p411 = pneg %p410
      $region66: #{tpu_custom_call.1} parent=5 // pred_check_branch
        %413 = sbr.rel (%p411) target = $region68
      $region67: #{tpu_custom_call.1} parent=5 // pred_region
        %s414 = ssub.s32 %s16, 2
      $region68: #{tpu_custom_call.1} parent=5 // pred_fallthru
        _
    $region6: #{tpu_custom_call.1} parent=1 // loop_footer
      %s20 = sadd.s32 1, %s16
    $region7: #{tpu_custom_call.1} parent=1 // loop_footer_branch
      %15 = sbr.rel target = $region3
    $region8: #{tpu_custom_call.1} parent=1 // loop_exit
      _
    %415 = vsyncpa [#allocation3], 1
    %s416 = scalar_lea.sflag [#allocation3], 1
    %417 = vsyncpa %s416, 1
    %418 = vsyncpa [#allocation6], 1
    %s419 = scalar_lea.sflag [#allocation6], 1
    %420 = vsyncpa %s419, 1
    %421 = vsyncpa [#allocation4], 1
    %s422 = scalar_lea.sflag [#allocation4], 1
    %423 = vsyncpa %s422, 1

</llo_original>
